<compile_context>
chip_gen: v7x
topology: tpu7x:2x2x1
jax: 0.10.0
libtpu: 0.0.40
codegen_flags: <defaults>
</compile_context>

<pallas_src>
import functools

import jax
import jax.numpy as jnp
import numpy as np
from jax import lax
from jax.experimental import pallas as pl
from jax.experimental.pallas import tpu as pltpu

CIN = 34      # CNN1D input_dim
COUT = 64     # CNN1D output_dim
K = 3         # kernel_size (stride=1, padding=1 -> L_out == L_in)


def _cnn1d_kernel(x_ref, w_ref, b_ref, o_ref, *, L, Lp, TB):
    """One batch tile.

    x_ref: (TB, Lp + 2, CIN) bf16, zero halo (1 row each side) + zero alignment
           rows so Lp % 16 == 0 (bf16 sublane packing).
    w_ref: (K, CIN, COUT)    bf16, per-tap conv weights.
    b_ref: (1, COUT)         f32 conv bias.
    o_ref: (TB, COUT)        pooled encoder output.
    """
    inv_L = jnp.float32(1.0 / L)                      # hoisted constant
    xp = x_ref[...]                                   # bf16 -> straight to MXU
    w = w_ref[...]                                    # (K, CIN, COUT) bf16
    b = b_ref[...].astype(jnp.float32)                # (1, COUT)

    # Conv1d(k=3, s=1, p=1) as three accumulating bf16 matmuls with f32
    # accumulation.  Static halo slices (offsets 0/1/2) replace the old
    # lane-axis im2col concat; Lp % 16 == 0 keeps the 3D->2D reshape free.
    y = jnp.dot(xp[:, 0:Lp, :].reshape(TB * Lp, CIN), w[0],
                preferred_element_type=jnp.float32)
    y += jnp.dot(xp[:, 1:Lp + 1, :].reshape(TB * Lp, CIN), w[1],
                 preferred_element_type=jnp.float32)
    y += jnp.dot(xp[:, 2:Lp + 2, :].reshape(TB * Lp, CIN), w[2],
                 preferred_element_type=jnp.float32)

    y = jnp.maximum(y + b, 0.0)                       # bias + ReLU (dropout=id)

    # AdaptiveAvgPool1d(1): mask alignment rows (l >= L), then a tile-aligned
    # full reduction over Lp, scaled by 1/L.
    y3 = y.reshape(TB, Lp, COUT)
    row = lax.broadcasted_iota(jnp.int32, (TB, Lp, 1), 1)
    y3 = jnp.where(row < L, y3, 0.0)
    o_ref[...] = (jnp.sum(y3, axis=1) * inv_L).astype(o_ref.dtype)


def _pick_batch_tile(B, L):
    """Pick TB from the *physical* (lane-padded) VMEM footprint.

    Everything with a 34- or 64-wide last dim pads to 128 lanes in VMEM:
      - input tile (bf16, double-buffered)            2 * (Lp+16)*128*2 / row
      - tap slices / 2-D reshape copies (bf16)       ~4 *  Lp    *128*2 / row
      - f32 conv output + reshape/mask copy           2 *  Lp    *128*4 / row
    Target ~12 MiB total so the pipeline fits default scoped VMEM on
    v5e (16 MiB) and well under v7x's 64 MiB physical.
    """
    lp = ((L + 15) // 16) * 16
    lp2 = lp + 16
    per_row = (2 * lp2 * 128 * 2) + (4 * lp * 128 * 2) + (2 * lp * 128 * 4)
    budget = 12 * 1024 * 1024

    if B <= 8:
        return B, B

    tb = max(8, min(128, budget // max(per_row, 1)))
    tb = (tb // 8) * 8
    # Keep >= 2 batch tiles so ("parallel",) can shard across the two v7x
    # TensorCores (and megacore on v5e/v6e).
    half8 = (((B + 1) // 2 + 7) // 8) * 8
    tb = max(8, min(tb, half8))
    b_pad = -(-B // tb) * tb
    return tb, b_pad


def predictor_cnn1d_forward(x_ncl, conv_w, conv_b):
    """x_ncl: (B, CIN, L) float32 (PyTorch NCL). Returns (B, COUT) float32."""
    B, Cin, L = x_ncl.shape
    assert Cin == CIN

    Lp = ((L + 15) // 16) * 16                 # bf16 sublane-aligned length
    TB, B_pad = _pick_batch_tile(B, L)

    # Single fused layout pass: channels-last transpose + bf16 cast + 1-row
    # zero halo + alignment rows (+ batch pad).  CIN/COUT land on the lane axis.
    x_blc = jnp.transpose(x_ncl, (0, 2, 1)).astype(jnp.bfloat16)       # (B,L,CIN)
    x_pad = jnp.pad(x_blc, ((0, B_pad - B), (1, Lp - L + 1), (0, 0)))  # (Bp,Lp+2,CIN)

    # PyTorch weight layout (COUT, CIN, K) -> per-tap (K, CIN, COUT), bf16.
    w_taps = jnp.transpose(conv_w, (2, 1, 0)).astype(jnp.bfloat16)
    b_2d = conv_b.reshape(1, COUT).astype(jnp.float32)

    kernel = functools.partial(_cnn1d_kernel, L=L, Lp=Lp, TB=TB)

    out = pl.pallas_call(
        kernel,
        out_shape=jax.ShapeDtypeStruct((B_pad, COUT), jnp.float32),
        grid=(B_pad // TB,),
        in_specs=[
            pl.BlockSpec((TB, Lp + 2, CIN), lambda b: (b, 0, 0)),
            pl.BlockSpec((K, CIN, COUT), lambda b: (0, 0, 0)),
            pl.BlockSpec((1, COUT), lambda b: (0, 0)),
        ],
        out_specs=pl.BlockSpec((TB, COUT), lambda b: (b, 0)),
        compiler_params=pltpu.CompilerParams(
            dimension_semantics=("parallel",),
            vmem_limit_bytes=32 * 1024 * 1024),
    )(x_pad, w_taps, b_2d)
    return out[:B].astype(x_ncl.dtype)


def _reference(x_ncl, conv_w, conv_b):
    """Pure-JAX reference on the same bf16-rounded inputs (f32 math)."""
    B, Cin, L = x_ncl.shape
    x = jnp.transpose(x_ncl, (0, 2, 1)).astype(jnp.bfloat16).astype(jnp.float32)
    w = jnp.transpose(conv_w, (2, 1, 0)).astype(jnp.bfloat16).astype(jnp.float32)
    xp = jnp.pad(x, ((0, 0), (1, 1), (0, 0)))
    y = sum(jnp.einsum("blc,co->blo", xp[:, k:k + L, :], w[k]) for k in range(K))
    y = jnp.maximum(y + conv_b[None, None, :].astype(jnp.float32), 0.0)
    return jnp.mean(y, axis=1)                                    # (B, COUT)


if __name__ == "__main__":
    key = jax.random.PRNGKey(0)
    k_x, k_w, k_b = jax.random.split(key, 3)

    B, L = 2, 18   # small shapes; L not a multiple of 8 to exercise the mask
    x = jax.random.normal(k_x, (B, CIN, L), dtype=jnp.float32)        # NCL input
    conv_w = 0.1 * jax.random.normal(k_w, (COUT, CIN, K), dtype=jnp.float32)
    conv_b = 0.1 * jax.random.normal(k_b, (COUT,), dtype=jnp.float32)

    out = jax.block_until_ready(predictor_cnn1d_forward(x, conv_w, conv_b))
    ref = jax.block_until_ready(_reference(x, conv_w, conv_b))
    np.testing.assert_allclose(np.asarray(out), np.asarray(ref),
                               rtol=2e-3, atol=2e-3)

    # TODO(synk): the 'resnet18'/'transformer'/'causal'/'simple' Predictor
    # branches are alternative backbones not exercised by this config; only
    # the 'cnn1d' branch is implemented.
    print("KERNEL_OK")
</pallas_src>

<mosaic_0001>
module attributes {stable_mosaic.version = 11 : i64} {
  func.func @_cnn1d_kernel(%arg0: i32, %arg1: memref<2x34x34xbf16, #tpu.memory_space<vmem>>, %arg2: memref<3x34x64xbf16, #tpu.memory_space<vmem>>, %arg3: memref<1x64xf32, #tpu.memory_space<vmem>>, %arg4: memref<2x64xf32, #tpu.memory_space<vmem>>) attributes {dimension_semantics = [#tpu.dimension_semantics<parallel>], iteration_bounds = array<i64: 1>, scalar_prefetch = 0 : i64, scratch_operands = 0 : i64, tpu.core_type = #tpu.core_type<tc>, window_params = [{transform_indices = @transform_0, window_bounds = array<i64: 2, 34, 34>}, {pipeline_mode = #tpu.pipeline_mode<synchronous>, transform_indices = @transform_1, window_bounds = array<i64: 3, 34, 64>}, {pipeline_mode = #tpu.pipeline_mode<synchronous>, transform_indices = @transform_2, window_bounds = array<i64: 1, 64>}, {transform_indices = @transform_3, window_bounds = array<i64: 2, 64>}]} {
    %c0 = arith.constant 0 : index
    %c0_0 = arith.constant 0 : index
    %c0_1 = arith.constant 0 : index
    %0 = vector.load %arg1[%c0, %c0_0, %c0_1] : memref<2x34x34xbf16, #tpu.memory_space<vmem>>, vector<2x34x34xbf16>
    %c0_2 = arith.constant 0 : index
    %c0_3 = arith.constant 0 : index
    %c0_4 = arith.constant 0 : index
    %1 = vector.load %arg2[%c0_2, %c0_3, %c0_4] : memref<3x34x64xbf16, #tpu.memory_space<vmem>>, vector<3x34x64xbf16>
    %c0_5 = arith.constant 0 : index
    %c0_6 = arith.constant 0 : index
    %2 = vector.load %arg3[%c0_5, %c0_6] : memref<1x64xf32, #tpu.memory_space<vmem>>, vector<1x64xf32>
    %3 = vector.extract_strided_slice %0 {offsets = [0, 0, 0], sizes = [2, 32, 34], strides = [1, 1, 1]} : vector<2x34x34xbf16> to vector<2x32x34xbf16>
    %4 = vector.shape_cast %3 : vector<2x32x34xbf16> to vector<64x34xbf16>
    %5 = vector.extract_strided_slice %1 {offsets = [0, 0, 0], sizes = [1, 34, 64], strides = [1, 1, 1]} : vector<3x34x64xbf16> to vector<1x34x64xbf16>
    %6 = vector.shape_cast %5 : vector<1x34x64xbf16> to vector<34x64xbf16>
    %cst = arith.constant dense<0.000000e+00> : vector<64x64xf32>
    %7 = tpu.matmul %4, %6, %cst {dimension_numbers = #tpu.dot_dimension_numbers<[1], [0], [0], [1], [0, 0, 1, 1], [], []>} : vector<64x34xbf16>, vector<34x64xbf16>, vector<64x64xf32> -> vector<64x64xf32>
    %8 = vector.extract_strided_slice %0 {offsets = [0, 1, 0], sizes = [2, 32, 34], strides = [1, 1, 1]} : vector<2x34x34xbf16> to vector<2x32x34xbf16>
    %9 = vector.shape_cast %8 : vector<2x32x34xbf16> to vector<64x34xbf16>
    %10 = vector.extract_strided_slice %1 {offsets = [1, 0, 0], sizes = [1, 34, 64], strides = [1, 1, 1]} : vector<3x34x64xbf16> to vector<1x34x64xbf16>
    %11 = vector.shape_cast %10 : vector<1x34x64xbf16> to vector<34x64xbf16>
    %cst_7 = arith.constant dense<0.000000e+00> : vector<64x64xf32>
    %12 = tpu.matmul %9, %11, %cst_7 {dimension_numbers = #tpu.dot_dimension_numbers<[1], [0], [0], [1], [0, 0, 1, 1], [], []>} : vector<64x34xbf16>, vector<34x64xbf16>, vector<64x64xf32> -> vector<64x64xf32>
    %13 = arith.addf %7, %12 : vector<64x64xf32>
    %14 = vector.extract_strided_slice %0 {offsets = [0, 2, 0], sizes = [2, 32, 34], strides = [1, 1, 1]} : vector<2x34x34xbf16> to vector<2x32x34xbf16>
    %15 = vector.shape_cast %14 : vector<2x32x34xbf16> to vector<64x34xbf16>
    %16 = vector.extract_strided_slice %1 {offsets = [2, 0, 0], sizes = [1, 34, 64], strides = [1, 1, 1]} : vector<3x34x64xbf16> to vector<1x34x64xbf16>
    %17 = vector.shape_cast %16 : vector<1x34x64xbf16> to vector<34x64xbf16>
    %cst_8 = arith.constant dense<0.000000e+00> : vector<64x64xf32>
    %18 = tpu.matmul %15, %17, %cst_8 {dimension_numbers = #tpu.dot_dimension_numbers<[1], [0], [0], [1], [0, 0, 1, 1], [], []>} : vector<64x34xbf16>, vector<34x64xbf16>, vector<64x64xf32> -> vector<64x64xf32>
    %19 = arith.addf %13, %18 : vector<64x64xf32>
    %20 = vector.broadcast %2 : vector<1x64xf32> to vector<64x64xf32>
    %21 = arith.addf %19, %20 : vector<64x64xf32>
    %cst_9 = arith.constant 0.000000e+00 : f32
    %22 = vector.broadcast %cst_9 : f32 to vector<64x64xf32>
    %23 = arith.maximumf %21, %22 : vector<64x64xf32>
    %24 = vector.shape_cast %23 : vector<64x64xf32> to vector<2x32x64xf32>
    %25 = tpu.iota {dimensions = array<i32: 1>} : vector<2x32x1xi32>
    %c18_i32 = arith.constant 18 : i32
    %26 = vector.broadcast %c18_i32 : i32 to vector<2x32x1xi32>
    %27 = arith.cmpi slt, %25, %26 : vector<2x32x1xi32>
    %cst_10 = arith.constant 0.000000e+00 : f32
    %28 = vector.shape_cast %27 : vector<2x32x1xi1> to vector<2x32x1xi1>
    %29 = vector.broadcast %28 : vector<2x32x1xi1> to vector<2x32x64xi1>
    %30 = vector.broadcast %cst_10 : f32 to vector<2x32x64xf32>
    %31 = arith.select %29, %24, %30 : vector<2x32x64xi1>, vector<2x32x64xf32>
    %cst_11 = arith.constant dense<0.000000e+00> : vector<2x64xf32>
    %32 = vector.multi_reduction <add>, %31, %cst_11 [1] : vector<2x32x64xf32> to vector<2x64xf32>
    %cst_12 = arith.constant 0.055555556 : f32
    %33 = vector.broadcast %cst_12 : f32 to vector<2x64xf32>
    %34 = arith.mulf %32, %33 : vector<2x64xf32>
    %c0_13 = arith.constant 0 : index
    %c0_14 = arith.constant 0 : index
    %35 = vector.load %arg4[%c0_13, %c0_14] : memref<2x64xf32, #tpu.memory_space<vmem>>, vector<2x64xf32>
    tpu.vector_store %arg4[%c0_13, %c0_14], %34 {strides = array<i32>} : memref<2x64xf32, #tpu.memory_space<vmem>>, vector<2x64xf32>,
    return
  }
  func.func @transform_0(%arg0: i32) -> (i32, i32, i32) {
    %c0_i32 = arith.constant 0 : i32
    %c0_i32_0 = arith.constant 0 : i32
    %c0_i32_1 = arith.constant 0 : i32
    return %arg0, %c0_i32, %c0_i32_0 : i32, i32, i32
  }
  func.func @transform_1(%arg0: i32) -> (i32, i32, i32) {
    %c0_i32 = arith.constant 0 : i32
    %c0_i32_0 = arith.constant 0 : i32
    %c0_i32_1 = arith.constant 0 : i32
    %c0_i32_2 = arith.constant 0 : i32
    return %c0_i32, %c0_i32_0, %c0_i32_1 : i32, i32, i32
  }
  func.func @transform_2(%arg0: i32) -> (i32, i32) {
    %c0_i32 = arith.constant 0 : i32
    %c0_i32_0 = arith.constant 0 : i32
    %c0_i32_1 = arith.constant 0 : i32
    return %c0_i32, %c0_i32_0 : i32, i32
  }
  func.func @transform_3(%arg0: i32) -> (i32, i32) {
    %c0_i32 = arith.constant 0 : i32
    %c0_i32_0 = arith.constant 0 : i32
    return %arg0, %c0_i32 : i32, i32
  }
}

</mosaic_0001>

<llo_original>
// kernel: tpu_custom_call.1
$region0: #{tpu_custom_call.1}
  #allocation0 [shape = 'u32[]', space=smem, size = 0x4, offset = 0x4, fixed_abs, tag = 'smem constant byte address 0x4 - core index']
  #allocation1 [shape = 'u32[144,128]{1,0:T(1,128)}', space=vmem, size = 0x12000, scoped, tag = 'internal scratch']
  %s0 = inlined_call_operand.vmem [shape: bf16[2,34,34], index: 0, kind: input, shape index: {}]
  %s1 = inlined_call_operand.vmem [shape: bf16[3,34,64], index: 1, kind: input, shape index: {}]
  %s2 = inlined_call_operand.vmem [shape: f32[1,64], index: 2, kind: input, shape index: {}]
  %s3 = inlined_call_operand.hbm [shape: f32[2,64], index: 3, kind: output, shape index: {}]
  %s4 = sld [smem:[#allocation0]]
  $region22: #{tpu_custom_call.1} parent=0
    _
  %s6 = ssub.s32 1, %s4
  %s7 = scalar_select 0, %s6, %s4
  $region1: #{tpu_custom_call.1} parent=0
    #allocation2 [shape = 'u8[1024]{0}', space=vmem, size = 0x400, scoped, tag = 'output window, operand 0, single buffered']
    #allocation3 [shape = 's32[1]{0}', space=sflag, size = 0x4, scoped, tag = 'scoped memory for tpu_custom_call.1']
    %8 = vsyncpa [#allocation3], 0
    // Predicated region
    $region2: #{tpu_custom_call.1} parent=1 // pred_check
      _
    $region3: #{tpu_custom_call.1} parent=1 // pred_check_branch
      %10 = sbr.rel (0) target = $region5
    $region4: #{tpu_custom_call.1} parent=1 // pred_region
      _
    $region5: #{tpu_custom_call.1} parent=1 // pred_fallthru
      _
    // Predicated region
    $region6: #{tpu_custom_call.1} parent=1 // pred_check
      _
    $region7: #{tpu_custom_call.1} parent=1 // pred_check_branch
      %12 = sbr.rel (0) target = $region9
    $region8: #{tpu_custom_call.1} parent=1 // pred_region
      _
    $region9: #{tpu_custom_call.1} parent=1 // pred_fallthru
      _
    // Predicated region
    $region10: #{tpu_custom_call.1} parent=1 // pred_check
      _
    $region11: #{tpu_custom_call.1} parent=1 // pred_check_branch
      %14 = sbr.rel (0) target = $region13
    $region12: #{tpu_custom_call.1} parent=1 // pred_region
      _
    $region13: #{tpu_custom_call.1} parent=1 // pred_fallthru
      _
    %v16 = vld [vmem:[%s0] sm:$0xf]
    %v17 = vld [vmem:[%s0 + $0x4] sm:$0xf]
    %v18 = vld [vmem:[%s0 + $0x8] sm:$0xf]
    %v19 = vld [vmem:[%s0 + $0xc] sm:$0xf]
    %v20 = vld [vmem:[%s0 + $0x10] sm:$0x1]
    %v21 = vld [vmem:[%s0 + $0x14] sm:$0xf]
    %v22 = vld [vmem:[%s0 + $0x18] sm:$0xf]
    %v23 = vld [vmem:[%s0 + $0x1c] sm:$0xf]
    %v24 = vld [vmem:[%s0 + $0x20] sm:$0xf]
    %v25 = vld [vmem:[%s0 + $0x24] sm:$0x1]
    %v26 = vld [vmem:[%s1] sm:$0xf]
    %v27 = vld [vmem:[%s1 + $0x4] sm:$0xf]
    %v28 = vld [vmem:[%s1 + $0x8] sm:$0xf]
    %v29 = vld [vmem:[%s1 + $0xc] sm:$0xf]
    %v30 = vld [vmem:[%s1 + $0x10] sm:$0x1]
    %v31 = vld [vmem:[%s1 + $0x14] sm:$0xf]
    %v32 = vld [vmem:[%s1 + $0x18] sm:$0xf]
    %v33 = vld [vmem:[%s1 + $0x1c] sm:$0xf]
    %v34 = vld [vmem:[%s1 + $0x20] sm:$0xf]
    %v35 = vld [vmem:[%s1 + $0x24] sm:$0x1]
    %v36 = vld [vmem:[%s1 + $0x28] sm:$0xf]
    %v37 = vld [vmem:[%s1 + $0x2c] sm:$0xf]
    %v38 = vld [vmem:[%s1 + $0x30] sm:$0xf]
    %v39 = vld [vmem:[%s1 + $0x34] sm:$0xf]
    %v40 = vld [vmem:[%s1 + $0x38] sm:$0x1]
    %v41 = vld [vmem:[%s2] sm:$0x1]
    %vm42 = vsmask.f32 3328
    %vm43 = vsmask.f32 7440
    %vm44 = vmor %vm42, %vm43
    %v46 = vshrl.u32 %v16, 16
    %v48 = vrot.slane %v46, 4
    %v49 = vshll.u32 %v16, 16
    %v51 = vrot.slane %v49, 5
    %v52 = vor.u32 %v48, %v51
    %v53 = vrot.slane %v52, 4
    %v55 = vshll.u32 %v17, 16
    %v57 = vrot.slane %v55, 5
    %v58 = vsel %vm44, %v53, %v57
    %v59 = vshrl.u32 %v17, 16
    %v61 = vrot.slane %v59, 4
    %v62 = vor.u32 %v61, %v57
    %v63 = vrot.slane %v62, 4
    %v65 = vshll.u32 %v18, 16
    %v67 = vrot.slane %v65, 5
    %v68 = vsel %vm44, %v63, %v67
    %v69 = vshrl.u32 %v18, 16
    %v71 = vrot.slane %v69, 4
    %v72 = vor.u32 %v71, %v67
    %v73 = vrot.slane %v72, 4
    %v75 = vshll.u32 %v19, 16
    %v77 = vrot.slane %v75, 5
    %v78 = vsel %vm44, %v73, %v77
    %v79 = vshrl.u32 %v19, 16
    %v81 = vrot.slane %v79, 4
    %v82 = vor.u32 %v81, %v77
    %v83 = vrot.slane %v82, 4
    %v85 = vshll.u32 %v20, 16
    %v87 = vrot.slane %v85, 5
    %v88 = vsel %vm44, %v83, %v87
    %v90 = vshrl.u32 %v21, 16
    %v92 = vrot.slane %v90, 4
    %v93 = vshll.u32 %v21, 16
    %v95 = vrot.slane %v93, 5
    %v96 = vor.u32 %v92, %v95
    %v97 = vrot.slane %v96, 4
    %v99 = vshll.u32 %v22, 16
    %v101 = vrot.slane %v99, 5
    %v102 = vsel %vm44, %v97, %v101
    %v103 = vshrl.u32 %v22, 16
    %v105 = vrot.slane %v103, 4
    %v106 = vor.u32 %v105, %v101
    %v107 = vrot.slane %v106, 4
    %v109 = vshll.u32 %v23, 16
    %v111 = vrot.slane %v109, 5
    %v112 = vsel %vm44, %v107, %v111
    %v113 = vshrl.u32 %v23, 16
    %v115 = vrot.slane %v113, 4
    %v116 = vor.u32 %v115, %v111
    %v117 = vrot.slane %v116, 4
    %v119 = vshll.u32 %v24, 16
    %v121 = vrot.slane %v119, 5
    %v122 = vsel %vm44, %v117, %v121
    %v123 = vshrl.u32 %v24, 16
    %v125 = vrot.slane %v123, 4
    %v126 = vor.u32 %v125, %v121
    %v127 = vrot.slane %v126, 4
    %v129 = vshll.u32 %v25, 16
    %v131 = vrot.slane %v129, 5
    %v132 = vsel %vm44, %v127, %v131
    %v133 = vunpack.c.l.b16 %v58
    %v134 = vunpack.c.l.b16 %v68
    %v135 = vunpack.c.l.b16 %v78
    %v136 = vunpack.c.l.b16 %v88
    %v137 = vunpack.c.l.b16 %v102
    %v138 = vunpack.c.l.b16 %v112
    %v139 = vunpack.c.l.b16 %v122
    %v140 = vunpack.c.l.b16 %v132
    %v141 = vpack.c.b16 %v134, %v133
    %v142 = vpack.c.b16 %v136, %v135
    %v143 = vpack.c.b16 %v138, %v137
    %v144 = vpack.c.b16 %v140, %v139
    %v150 = vunpack.c.l.b16 %v31
    %v151 = vunpack.c.l.b16 %v32
    %v152 = vunpack.c.l.b16 %v33
    %v153 = vunpack.c.l.b16 %v34
    %v154 = vunpack.c.l.b16 %v35
    %v155 = vpack.c.b16 %v151, %v150
    %v156 = vpack.c.b16 %v153, %v152
    %v157 = vpack.c.b16 %v154, %v154
    %vm160 = vcmask 277504
    %v162 = vsel %vm160, %v141, 0
    %v165 = vsel %vm160, %v142, 0
    %v168 = vsel %vm160, %v143, 0
    %v171 = vsel %vm160, %v144, 0
    %vm173 = vcmask 1040384
    %v175 = vsel %vm173, %v157, 0
    %177 = vmatprep.subr.bf16.mxu0 0
    %178 = vmatpush1.bf16.msra.mxu0 %v155
    %179 = vmatprep.subr.bf16.mxu0 0
    %180 = vmatpush1.bf16.msra.mxu0 %v156
    %181 = vmatprep.subr.bf16.mxu0 0
    %182 = vmatpush1.bf16.msra.mxu0 %v175
    %183 = vmatprep.subr.bf16.mxu0 0
    %184 = vmatpush1.bf16.msra.mxu0 0
    %185 = vmatprep.subr.bf16.mxu0 0
    %186 = vmatpush1.bf16.msra.mxu0 0
    %187 = vmatprep.subr.bf16.mxu0 0
    %188 = vmatpush1.bf16.msra.mxu0 0
    %189 = vmatprep.subr.bf16.mxu0 0
    %190 = vmatpush1.bf16.msra.mxu0 0
    %191 = vmatprep.subr.bf16.mxu0 0
    %192 = vmatpush1.bf16.msra.mxu0 0
    %193 = vmatprep.subr.bf16.mxu0 0
    %194 = vmatpush1.bf16.msra.mxu0 0
    %195 = vmatprep.subr.bf16.mxu0 0
    %196 = vmatpush1.bf16.msra.mxu0 0
    %197 = vmatprep.subr.bf16.mxu0 0
    %198 = vmatpush1.bf16.msra.mxu0 0
    %199 = vmatprep.subr.bf16.mxu0 0
    %200 = vmatpush1.bf16.msra.mxu0 0
    %201 = vmatprep.subr.bf16.mxu0 0
    %202 = vmatpush1.bf16.msra.mxu0 0
    %203 = vmatprep.subr.bf16.mxu0 0
    %204 = vmatpush1.bf16.msra.mxu0 0
    %205 = vmatprep.subr.bf16.mxu0 0
    %206 = vmatpush1.bf16.msra.mxu0 0
    %207 = vmatprep.subr.bf16.mxu0 0
    %208 = vmatpush1.bf16.msra.mxu0 0
    %209 = vmatprep.mubr.bf16.mxu0 0
    %210 = vmatmul.mubr.bf16.gmra.mrb[0].mxu0 %v162
    %v211 = vpop.f32.mrb[0].mxu0
    %v212 = vadd.f32 0.0, %v211
    %v213 = vpop.f32.mrb[0].mxu0
    %v214 = vpop.f32.mrb[0].mxu0
    %v215 = vadd.f32 0.0, %v214
    %v216 = vpop.f32.mrb[0].mxu0
    %217 = vmatprep.mubr.bf16.mxu0 0
    %218 = vmatmul.mubr.bf16.gmra.mrb[0].mxu0 %v165
    %v219 = vpop.f32.mrb[0].mxu0
    %v220 = vadd.f32 0.0, %v219
    %v221 = vpop.f32.mrb[0].mxu0
    %v222 = vpop.f32.mrb[0].mxu0
    %v223 = vadd.f32 0.0, %v222
    %v224 = vpop.f32.mrb[0].mxu0
    %225 = vmatprep.mubr.bf16.mxu0 0
    %226 = vmatmul.mubr.bf16.gmra.mrb[0].mxu0 %v168
    %v227 = vpop.f32.mrb[0].mxu0
    %v228 = vadd.f32 0.0, %v227
    %v229 = vpop.f32.mrb[0].mxu0
    %v230 = vpop.f32.mrb[0].mxu0
    %v231 = vadd.f32 0.0, %v230
    %v232 = vpop.f32.mrb[0].mxu0
    %233 = vmatprep.mubr.bf16.mxu0 0
    %234 = vmatmul.mubr.bf16.gmra.mrb[0].mxu0 %v171
    %v235 = vpop.f32.mrb[0].mxu0
    %v236 = vadd.f32 0.0, %v235
    %v237 = vpop.f32.mrb[0].mxu0
    %v238 = vpop.f32.mrb[0].mxu0
    %v239 = vadd.f32 0.0, %v238
    %v240 = vpop.f32.mrb[0].mxu0
    %241 = vdwg.mxu0
    %v250 = vunpack.c.l.b16 %v16
    %v251 = vunpack.c.l.b16 %v17
    %v252 = vunpack.c.l.b16 %v18
    %v253 = vunpack.c.l.b16 %v19
    %v254 = vunpack.c.l.b16 %v21
    %v255 = vunpack.c.l.b16 %v22
    %v256 = vunpack.c.l.b16 %v23
    %v257 = vunpack.c.l.b16 %v24
    %v258 = vpack.c.b16 %v251, %v250
    %v259 = vpack.c.b16 %v253, %v252
    %v260 = vpack.c.b16 %v255, %v254
    %v261 = vpack.c.b16 %v257, %v256
    %v267 = vunpack.c.l.b16 %v26
    %v268 = vunpack.c.l.b16 %v27
    %v269 = vunpack.c.l.b16 %v28
    %v270 = vunpack.c.l.b16 %v29
    %v271 = vunpack.c.l.b16 %v30
    %v272 = vpack.c.b16 %v268, %v267
    %v273 = vpack.c.b16 %v270, %v269
    %v274 = vpack.c.b16 %v271, %v271
    %v278 = vsel %vm160, %v258, 0
    %v281 = vsel %vm160, %v259, 0
    %v284 = vsel %vm160, %v260, 0
    %v287 = vsel %vm160, %v261, 0
    %v290 = vsel %vm173, %v274, 0
    %292 = vmatprep.subr.bf16.mxu0 0
    %293 = vmatpush1.bf16.msra.mxu0 %v272
    %294 = vmatprep.subr.bf16.mxu0 0
    %295 = vmatpush1.bf16.msra.mxu0 %v273
    %296 = vmatprep.subr.bf16.mxu0 0
    %297 = vmatpush1.bf16.msra.mxu0 %v290
    %298 = vmatprep.subr.bf16.mxu0 0
    %299 = vmatpush1.bf16.msra.mxu0 0
    %300 = vmatprep.subr.bf16.mxu0 0
    %301 = vmatpush1.bf16.msra.mxu0 0
    %302 = vmatprep.subr.bf16.mxu0 0
    %303 = vmatpush1.bf16.msra.mxu0 0
    %304 = vmatprep.subr.bf16.mxu0 0
    %305 = vmatpush1.bf16.msra.mxu0 0
    %306 = vmatprep.subr.bf16.mxu0 0
    %307 = vmatpush1.bf16.msra.mxu0 0
    %308 = vmatprep.subr.bf16.mxu0 0
    %309 = vmatpush1.bf16.msra.mxu0 0
    %310 = vmatprep.subr.bf16.mxu0 0
    %311 = vmatpush1.bf16.msra.mxu0 0
    %312 = vmatprep.subr.bf16.mxu0 0
    %313 = vmatpush1.bf16.msra.mxu0 0
    %314 = vmatprep.subr.bf16.mxu0 0
    %315 = vmatpush1.bf16.msra.mxu0 0
    %316 = vmatprep.subr.bf16.mxu0 0
    %317 = vmatpush1.bf16.msra.mxu0 0
    %318 = vmatprep.subr.bf16.mxu0 0
    %319 = vmatpush1.bf16.msra.mxu0 0
    %320 = vmatprep.subr.bf16.mxu0 0
    %321 = vmatpush1.bf16.msra.mxu0 0
    %322 = vmatprep.subr.bf16.mxu0 0
    %323 = vmatpush1.bf16.msra.mxu0 0
    %324 = vmatprep.mubr.bf16.mxu0 0
    %325 = vmatmul.mubr.bf16.gmra.mrb[0].mxu0 %v278
    %v326 = vpop.f32.mrb[0].mxu0
    %v327 = vadd.f32 %v212, %v326
    %v328 = vpop.f32.mrb[0].mxu0
    %v329 = vpop.f32.mrb[0].mxu0
    %v330 = vadd.f32 %v215, %v329
    %v331 = vpop.f32.mrb[0].mxu0
    %332 = vmatprep.mubr.bf16.mxu0 0
    %333 = vmatmul.mubr.bf16.gmra.mrb[0].mxu0 %v281
    %v334 = vpop.f32.mrb[0].mxu0
    %v335 = vadd.f32 %v220, %v334
    %v336 = vpop.f32.mrb[0].mxu0
    %v337 = vpop.f32.mrb[0].mxu0
    %v338 = vadd.f32 %v223, %v337
    %v339 = vpop.f32.mrb[0].mxu0
    %340 = vmatprep.mubr.bf16.mxu0 0
    %341 = vmatmul.mubr.bf16.gmra.mrb[0].mxu0 %v284
    %v342 = vpop.f32.mrb[0].mxu0
    %v343 = vadd.f32 %v228, %v342
    %v344 = vpop.f32.mrb[0].mxu0
    %v345 = vpop.f32.mrb[0].mxu0
    %v346 = vadd.f32 %v231, %v345
    %v347 = vpop.f32.mrb[0].mxu0
    %348 = vmatprep.mubr.bf16.mxu0 0
    %349 = vmatmul.mubr.bf16.gmra.mrb[0].mxu0 %v287
    %v350 = vpop.f32.mrb[0].mxu0
    %v351 = vadd.f32 %v236, %v350
    %v352 = vpop.f32.mrb[0].mxu0
    %v353 = vpop.f32.mrb[0].mxu0
    %v354 = vadd.f32 %v239, %v353
    %v355 = vpop.f32.mrb[0].mxu0
    %356 = vdwg.mxu0
    %vm359 = vcmask 1042432
    %vm360 = vcmask 1046532
    %vm361 = vmor %vm359, %vm360
    %v362 = vrot.slane %v16, 5
    %v363 = vrot.slane %v362, 4
    %v364 = vrot.slane %v17, 5
    %v365 = vsel %vm361, %v363, %v364
    %v366 = vrot.slane %v364, 4
    %v367 = vrot.slane %v18, 5
    %v368 = vsel %vm361, %v366, %v367
    %v369 = vrot.slane %v367, 4
    %v370 = vrot.slane %v19, 5
    %v371 = vsel %vm361, %v369, %v370
    %v372 = vrot.slane %v370, 4
    %v373 = vrot.slane %v20, 5
    %v374 = vsel %vm361, %v372, %v373
    %v375 = vrot.slane %v21, 5
    %v376 = vrot.slane %v375, 4
    %v377 = vrot.slane %v22, 5
    %v378 = vsel %vm361, %v376, %v377
    %v379 = vrot.slane %v377, 4
    %v380 = vrot.slane %v23, 5
    %v381 = vsel %vm361, %v379, %v380
    %v382 = vrot.slane %v380, 4
    %v383 = vrot.slane %v24, 5
    %v384 = vsel %vm361, %v382, %v383
    %v385 = vrot.slane %v383, 4
    %v386 = vrot.slane %v25, 5
    %v387 = vsel %vm361, %v385, %v386
    %v388 = vunpack.c.l.b16 %v365
    %v389 = vunpack.c.l.b16 %v368
    %v390 = vunpack.c.l.b16 %v371
    %v391 = vunpack.c.l.b16 %v374
    %v392 = vunpack.c.l.b16 %v378
    %v393 = vunpack.c.l.b16 %v381
    %v394 = vunpack.c.l.b16 %v384
    %v395 = vunpack.c.l.b16 %v387
    %v396 = vpack.c.b16 %v389, %v388
    %v397 = vpack.c.b16 %v391, %v390
    %v398 = vpack.c.b16 %v393, %v392
    %v399 = vpack.c.b16 %v395, %v394
    %v405 = vunpack.c.l.b16 %v36
    %v406 = vunpack.c.l.b16 %v37
    %v407 = vunpack.c.l.b16 %v38
    %v408 = vunpack.c.l.b16 %v39
    %v409 = vunpack.c.l.b16 %v40
    %v410 = vpack.c.b16 %v406, %v405
    %v411 = vpack.c.b16 %v408, %v407
    %v412 = vpack.c.b16 %v409, %v409
    %v416 = vsel %vm160, %v396, 0
    %v419 = vsel %vm160, %v397, 0
    %v422 = vsel %vm160, %v398, 0
    %v425 = vsel %vm160, %v399, 0
    %v428 = vsel %vm173, %v412, 0
    %430 = vmatprep.subr.bf16.mxu0 0
    %431 = vmatpush1.bf16.msra.mxu0 %v410
    %432 = vmatprep.subr.bf16.mxu0 0
    %433 = vmatpush1.bf16.msra.mxu0 %v411
    %434 = vmatprep.subr.bf16.mxu0 0
    %435 = vmatpush1.bf16.msra.mxu0 %v428
    %436 = vmatprep.subr.bf16.mxu0 0
    %437 = vmatpush1.bf16.msra.mxu0 0
    %438 = vmatprep.subr.bf16.mxu0 0
    %439 = vmatpush1.bf16.msra.mxu0 0
    %440 = vmatprep.subr.bf16.mxu0 0
    %441 = vmatpush1.bf16.msra.mxu0 0
    %442 = vmatprep.subr.bf16.mxu0 0
    %443 = vmatpush1.bf16.msra.mxu0 0
    %444 = vmatprep.subr.bf16.mxu0 0
    %445 = vmatpush1.bf16.msra.mxu0 0
    %446 = vmatprep.subr.bf16.mxu0 0
    %447 = vmatpush1.bf16.msra.mxu0 0
    %448 = vmatprep.subr.bf16.mxu0 0
    %449 = vmatpush1.bf16.msra.mxu0 0
    %450 = vmatprep.subr.bf16.mxu0 0
    %451 = vmatpush1.bf16.msra.mxu0 0
    %452 = vmatprep.subr.bf16.mxu0 0
    %453 = vmatpush1.bf16.msra.mxu0 0
    %454 = vmatprep.subr.bf16.mxu0 0
    %455 = vmatpush1.bf16.msra.mxu0 0
    %456 = vmatprep.subr.bf16.mxu0 0
    %457 = vmatpush1.bf16.msra.mxu0 0
    %458 = vmatprep.subr.bf16.mxu0 0
    %459 = vmatpush1.bf16.msra.mxu0 0
    %460 = vmatprep.subr.bf16.mxu0 0
    %461 = vmatpush1.bf16.msra.mxu0 0
    %462 = vmatprep.mubr.bf16.mxu0 0
    %463 = vmatmul.mubr.bf16.gmra.mrb[0].mxu0 %v416
    %v464 = vpop.f32.mrb[0].mxu0
    %v465 = vadd.f32 0.0, %v464
    %v466 = vpop.f32.mrb[0].mxu0
    %v467 = vpop.f32.mrb[0].mxu0
    %v468 = vadd.f32 0.0, %v467
    %v469 = vpop.f32.mrb[0].mxu0
    %470 = vmatprep.mubr.bf16.mxu0 0
    %471 = vmatmul.mubr.bf16.gmra.mrb[0].mxu0 %v419
    %v472 = vpop.f32.mrb[0].mxu0
    %v473 = vadd.f32 0.0, %v472
    %v474 = vpop.f32.mrb[0].mxu0
    %v475 = vpop.f32.mrb[0].mxu0
    %v476 = vadd.f32 0.0, %v475
    %v477 = vpop.f32.mrb[0].mxu0
    %478 = vmatprep.mubr.bf16.mxu0 0
    %479 = vmatmul.mubr.bf16.gmra.mrb[0].mxu0 %v422
    %v480 = vpop.f32.mrb[0].mxu0
    %v481 = vadd.f32 0.0, %v480
    %v482 = vpop.f32.mrb[0].mxu0
    %v483 = vpop.f32.mrb[0].mxu0
    %v484 = vadd.f32 0.0, %v483
    %v485 = vpop.f32.mrb[0].mxu0
    %486 = vmatprep.mubr.bf16.mxu0 0
    %487 = vmatmul.mubr.bf16.gmra.mrb[0].mxu0 %v425
    %v488 = vpop.f32.mrb[0].mxu0
    %v489 = vadd.f32 0.0, %v488
    %v490 = vpop.f32.mrb[0].mxu0
    %v491 = vpop.f32.mrb[0].mxu0
    %v492 = vadd.f32 0.0, %v491
    %v493 = vpop.f32.mrb[0].mxu0
    %494 = vdwg.mxu0
    %v495 = vadd.f32 %v327, %v465
    %v496 = vadd.f32 %v330, %v468
    %v497 = vadd.f32 %v335, %v473
    %v498 = vadd.f32 %v338, %v476
    %v499 = vadd.f32 %v343, %v481
    %v500 = vadd.f32 %v346, %v484
    %v501 = vadd.f32 %v351, %v489
    %v502 = vadd.f32 %v354, %v492
    %v504 = vlaneseq
    %v505 = vshrl.u32 %v504, 7
    %v506 = vsub.s32 0, %v505
    %v507 = vrot.slane %v41, %v506
    %v509 = vadd.f32 %v495, %v507
    %v510 = vadd.f32 %v496, %v507
    %v511 = vadd.f32 %v497, %v507
    %v512 = vadd.f32 %v498, %v507
    %v513 = vadd.f32 %v499, %v507
    %v514 = vadd.f32 %v500, %v507
    %v515 = vadd.f32 %v501, %v507
    %v516 = vadd.f32 %v502, %v507
    %v517 = vmax.f32 %v509, 0.0
    %v518 = vmax.f32 %v510, 0.0
    %v519 = vmax.f32 %v511, 0.0
    %v520 = vmax.f32 %v512, 0.0
    %v521 = vmax.f32 %v513, 0.0
    %v522 = vmax.f32 %v514, 0.0
    %v523 = vmax.f32 %v515, 0.0
    %v524 = vmax.f32 %v516, 0.0
    %v525 = vlaneseq
    %v526 = vshrl.u32 %v525, 7
    %v527 = vadd.s32 %v526, 8
    %v528 = vadd.s32 %v526, 16
    %v529 = vadd.s32 %v526, 24
    %vm530 = vcmp.lt.s32.totalorder %v526, 18
    %vm531 = vcmp.lt.s32.totalorder %v527, 18
    %vm532 = vcmp.lt.s32.totalorder %v528, 18
    %vm533 = vcmp.lt.s32.totalorder %v529, 18
    %v534 = vsel %vm530, 1, 0
    %v535 = vsel %vm531, 1, 0
    %v536 = vsel %vm532, 1, 0
    %v537 = vsel %vm533, 1, 0
    %vm538 = vcmp.eq.s32.totalorder %v534, 1
    %vm539 = vcmp.eq.s32.totalorder %v535, 1
    %vm540 = vcmp.eq.s32.totalorder %v536, 1
    %vm541 = vcmp.eq.s32.totalorder %v537, 1
    %v542 = vsel %vm538, %v517, 0.0
    %v543 = vsel %vm539, %v518, 0.0
    %v544 = vsel %vm540, %v519, 0.0
    %v545 = vsel %vm541, %v520, 0.0
    %v546 = vsel %vm538, %v521, 0.0
    %v547 = vsel %vm539, %v522, 0.0
    %v548 = vsel %vm540, %v523, 0.0
    %v549 = vsel %vm541, %v524, 0.0
    %vm550 = vcmask 523264
    %v551 = vsel %vm550, %v542, 0.0
    %v552 = vsel %vm550, %v543, 0.0
    %v553 = vadd.f32 %v551, %v552
    %v554 = vsel %vm550, %v544, 0.0
    %v555 = vadd.f32 %v553, %v554
    %v556 = vsel %vm550, %v545, 0.0
    %v557 = vadd.f32 %v555, %v556
    %v558 = vrot.slane %v557, 4
    %v559 = vadd.f32 %v557, %v558
    %v560 = vrot.slane %v559, 2
    %v561 = vadd.f32 %v559, %v560
    %v562 = vrot.slane %v561, 1
    %v563 = vadd.f32 %v561, %v562
    %v564 = vsel %vm550, %v546, 0.0
    %v565 = vsel %vm550, %v547, 0.0
    %v566 = vadd.f32 %v564, %v565
    %v567 = vsel %vm550, %v548, 0.0
    %v568 = vadd.f32 %v566, %v567
    %v569 = vsel %vm550, %v549, 0.0
    %v570 = vadd.f32 %v568, %v569
    %v571 = vrot.slane %v570, 4
    %v572 = vadd.f32 %v570, %v571
    %v573 = vrot.slane %v572, 2
    %v574 = vadd.f32 %v572, %v573
    %v575 = vrot.slane %v574, 1
    %v576 = vadd.f32 %v574, %v575
    %v577 = vmul.f32 %v563, 0.055555556
    %v578 = vmul.f32 %v576, 0.055555556
    %vm581 = vcmask 1041409
    %v582 = vsel %vm581, %v578, %v577
    %vm584 = vcmask 517120
    %585 = vst.msk [vmem:[#allocation2] sm:$0x3] %vm584, %v582
    // Predicated region
    $region14: #{tpu_custom_call.1} parent=1 // pred_check
      _
    $region15: #{tpu_custom_call.1} parent=1 // pred_check_branch
      %587 = sbr.rel (0) target = $region17
    $region16: #{tpu_custom_call.1} parent=1 // pred_region
      %s589 = ssub.s32 32, 32
      %590 = vsyncadd [#allocation3], %s589
      %s592 = sshll.u32 [#allocation2], 4
      %s593 = int_to_ptr.vmem [resolvable:$true] %s592
      %595 = dma.vmem_to_hbm [thread:$0]  %s593, 32, %s3, [#allocation3]
    $region17: #{tpu_custom_call.1} parent=1 // pred_fallthru
      _
    // Predicated region
    $region18: #{tpu_custom_call.1} parent=1 // pred_check
      _
    $region19: #{tpu_custom_call.1} parent=1 // pred_check_branch
      %597 = sbr.rel (0) target = $region21
    $region20: #{tpu_custom_call.1} parent=1 // pred_region
      %598 = dma.done [#allocation3], 32
    $region21: #{tpu_custom_call.1} parent=1 // pred_fallthru
      _
    %599 = vsyncpa [#allocation3], 1

</llo_original>
